<compile_context>
chip_gen: v5e
topology: v5e:2x2
jax: 0.10.0
libtpu: 0.0.40
codegen_flags: <defaults>
</compile_context>

<pallas_src>
import functools

import jax
import jax.numpy as jnp
from jax import lax
from jax.experimental import pallas as pl
from jax.experimental.pallas import tpu as pltpu


# ----------------------------------------------------------------------------
# Fused kernel: conv (as K*K MXU matmuls) + folded-BN bias + optional ReLU
# ----------------------------------------------------------------------------
def basic_conv_kernel(x_ref, w_ref, b_ref, m_ref, o_ref, *, K, W, HW, BT, relu):
    # x_ref : (BT, Cin, L)      padded, flattened images (L = (H+2p)*W + 2p)
    # w_ref : (K*K, Cout, Cin)  BN-folded weights, tap-major [kh*K + kw]
    # b_ref : (Cout, 1)         BN-folded bias
    # m_ref : (K, HW)           0/1 column-validity mask per horizontal offset
    # o_ref : (BT, Cout, HW)    output, H*W on the lane axis (lane-dense store)
    wts = w_ref[...]
    bias = b_ref[...]
    msk = m_ref[...]
    p = (K - 1) // 2
    cout = wts.shape[1]

    for bi in range(BT):                         # static loop over images in block
        acc = jnp.zeros((cout, HW), jnp.float32)
        for kw in range(K):                      # horizontal tap offset
            part = jnp.zeros((cout, HW), jnp.float32)
            for kh in range(K):                  # vertical tap offset
                s = kh * W + kw                  # static flat shift of this tap
                xs = x_ref[bi, :, s:s + HW]      # (Cin, HW) lane-shifted view
                part = part + jnp.dot(
                    wts[kh * K + kw],            # (Cout, Cin)
                    xs,
                    preferred_element_type=jnp.float32)
            if kw == p:                          # centered column: never wraps
                acc = acc + part
            else:                                # zero wrapped boundary columns
                acc = acc + part * msk[kw:kw + 1, :]
        y = acc + bias                           # folded conv-bias + BN
        if relu:
            y = jnp.maximum(y, 0.0)
        o_ref[bi] = y.astype(o_ref.dtype)


# ----------------------------------------------------------------------------
# Wrapper: host-side BN folding, padding, mask prep, pallas_call
# ----------------------------------------------------------------------------
def basic_conv(x, conv_w, conv_b=None, bn_params=None, *,
               padding, relu=True, eps=1e-5, block_b=1):
    """Fused Conv2d(+bias) -> BatchNorm2d(eval) -> ReLU.  NCHW in / NCHW out."""
    B, Cin, H, W = x.shape
    Cout, Cin_w, K, K2 = conv_w.shape
    assert K == K2 and Cin_w == Cin
    assert padding == (K - 1) // 2, "TODO(synk): only 'same' stride-1 conv"
    assert B % block_b == 0
    p = padding
    HW = H * W

    # ---- fold eval-mode BN (and optional conv bias) into weight + bias ----
    cb = jnp.zeros((Cout,), jnp.float32) if conv_b is None else conv_b
    if bn_params is not None:
        gamma, beta, mean, var = bn_params
        inv = gamma * lax.rsqrt(var + eps)                     # (Cout,)
        w_f = conv_w * inv[:, None, None, None]
        b_f = (cb - mean) * inv + beta
    else:
        w_f, b_f = conv_w, cb

    # tap-major weight layout (kh*K + kw, Cout, Cin)
    w_taps = jnp.transpose(w_f, (2, 3, 0, 1)).reshape(K * K, Cout, Cin)
    bias = b_f.reshape(Cout, 1)

    # pre-padded, flattened input: element (h, w) lives at p*W + p + h*W + w,
    # so tap (kh, kw) of output pixel j is at flat index j + kh*W + kw.
    front = p * W + p
    xpf = jnp.pad(x.reshape(B, Cin, HW), ((0, 0), (0, 0), (front, front)))
    L = HW + 2 * front

    # 0/1 column-validity mask per horizontal tap offset kw:
    # valid iff 0 <= w + kw - p < W (zero columns that wrapped to the next row)
    col = jnp.arange(HW, dtype=jnp.int32) % W
    off = jnp.arange(K, dtype=jnp.int32)[:, None] - p
    mask = ((col[None, :] + off >= 0) &
            (col[None, :] + off < W)).astype(jnp.float32)      # (K, HW)

    kern = functools.partial(basic_conv_kernel, K=K, W=W, HW=HW,
                             BT=block_b, relu=relu)
    out = pl.pallas_call(
        kern,
        out_shape=jax.ShapeDtypeStruct((B, Cout, HW), jnp.float32),
        grid_spec=pltpu.PrefetchScalarGridSpec(
            num_scalar_prefetch=0,
            grid=(B // block_b,),
            in_specs=[
                pl.BlockSpec((block_b, Cin, L), lambda g: (g, 0, 0)),
                pl.BlockSpec((K * K, Cout, Cin), lambda g: (0, 0, 0)),
                pl.BlockSpec((Cout, 1), lambda g: (0, 0)),
                pl.BlockSpec((K, HW), lambda g: (0, 0)),
            ],
            out_specs=pl.BlockSpec((block_b, Cout, HW), lambda g: (g, 0, 0)),
        ),
        compiler_params=pltpu.CompilerParams(
            dimension_semantics=("parallel",)),
    )(xpf.astype(jnp.float32), w_taps.astype(jnp.float32),
      bias.astype(jnp.float32), mask)

    return out.reshape(B, Cout, H, W)            # pure metadata reshape


# ----------------------------------------------------------------------------
# Pure-JAX reference (mirrors the PyTorch forward, eval-mode BN)
# ----------------------------------------------------------------------------
def basic_conv_reference(x, conv_w, conv_b=None, bn_params=None, *,
                         padding, relu=True, eps=1e-5):
    y = lax.conv_general_dilated(
        x, conv_w, window_strides=(1, 1),
        padding=[(padding, padding), (padding, padding)],
        dimension_numbers=("NCHW", "OIHW", "NCHW"))
    if conv_b is not None:
        y = y + conv_b[None, :, None, None]
    if bn_params is not None:
        gamma, beta, mean, var = bn_params
        y = (gamma[None, :, None, None] * (y - mean[None, :, None, None])
             * lax.rsqrt(var[None, :, None, None] + eps)
             + beta[None, :, None, None])
    if relu:
        y = jnp.maximum(y, 0.0)
    return y


if __name__ == "__main__":
    key = jax.random.PRNGKey(0)
    ks = jax.random.split(key, 8)

    # Case 1: BasicConv(4, 16, kernel_size=3, padding=1, relu=True, bn=True)
    B, Cin, Cout, H, W, K = 2, 4, 16, 16, 16, 3
    x = jax.random.normal(ks[0], (B, Cin, H, W), jnp.float32)
    conv_w = 0.2 * jax.random.normal(ks[1], (Cout, Cin, K, K), jnp.float32)
    bn = (1.0 + 0.1 * jax.random.normal(ks[2], (Cout,), jnp.float32),   # gamma
          0.1 * jax.random.normal(ks[3], (Cout,), jnp.float32),         # beta
          0.05 * jax.random.normal(ks[4], (Cout,), jnp.float32),        # running_mean
          0.5 + jax.random.uniform(ks[5], (Cout,), jnp.float32))        # running_var
    out = jax.block_until_ready(
        basic_conv(x, conv_w, None, bn, padding=1, relu=True, block_b=1))
    ref = basic_conv_reference(x, conv_w, None, bn, padding=1, relu=True)
    assert out.shape == (B, Cout, H, W)
    assert jnp.allclose(out, ref, atol=1e-4, rtol=1e-4), "case1 mismatch vs reference"

    # Case 2: mirrornet usage -- BasicConv(2, 1, kernel_size=7, padding=3, relu=False)
    Cin2, Cout2, K2 = 2, 1, 7
    x2 = jax.random.normal(ks[6], (B, Cin2, H, W), jnp.float32)
    conv_w2 = 0.1 * jax.random.normal(ks[7], (Cout2, Cin2, K2, K2), jnp.float32)
    bn2 = (jnp.array([1.1], jnp.float32), jnp.array([-0.05], jnp.float32),
           jnp.array([0.02], jnp.float32), jnp.array([0.9], jnp.float32))
    out2 = jax.block_until_ready(
        basic_conv(x2, conv_w2, None, bn2, padding=3, relu=False, block_b=2))
    ref2 = basic_conv_reference(x2, conv_w2, None, bn2, padding=3, relu=False)
    assert out2.shape == (B, Cout2, H, W)
    assert jnp.allclose(out2, ref2, atol=1e-4, rtol=1e-4), "case2 mismatch vs reference"

    print("KERNEL_OK")
</pallas_src>

<mosaic_0001>
module attributes {stable_mosaic.version = 11 : i64} {
  func.func @basic_conv_kernel(%arg0: i32, %arg1: memref<1x4x290xf32, #tpu.memory_space<vmem>>, %arg2: memref<9x16x4xf32, #tpu.memory_space<vmem>>, %arg3: memref<16x1xf32, #tpu.memory_space<vmem>>, %arg4: memref<3x256xf32, #tpu.memory_space<vmem>>, %arg5: memref<1x16x256xf32, #tpu.memory_space<vmem>>) attributes {dimension_semantics = [#tpu.dimension_semantics<parallel>], iteration_bounds = array<i64: 2>, scalar_prefetch = 0 : i64, scratch_operands = 0 : i64, tpu.core_type = #tpu.core_type<tc>, window_params = [{transform_indices = @transform_0, window_bounds = array<i64: 1, 4, 290>}, {pipeline_mode = #tpu.pipeline_mode<synchronous>, transform_indices = @transform_1, window_bounds = array<i64: 9, 16, 4>}, {pipeline_mode = #tpu.pipeline_mode<synchronous>, transform_indices = @transform_2, window_bounds = array<i64: 16, 1>}, {pipeline_mode = #tpu.pipeline_mode<synchronous>, transform_indices = @transform_3, window_bounds = array<i64: 3, 256>}, {transform_indices = @transform_4, window_bounds = array<i64: 1, 16, 256>}]} {
    %c0 = arith.constant 0 : index
    %c0_0 = arith.constant 0 : index
    %c0_1 = arith.constant 0 : index
    %0 = vector.load %arg2[%c0, %c0_0, %c0_1] : memref<9x16x4xf32, #tpu.memory_space<vmem>>, vector<9x16x4xf32>
    %c0_2 = arith.constant 0 : index
    %c0_3 = arith.constant 0 : index
    %1 = vector.load %arg3[%c0_2, %c0_3] : memref<16x1xf32, #tpu.memory_space<vmem>>, vector<16x1xf32>
    %c0_4 = arith.constant 0 : index
    %c0_5 = arith.constant 0 : index
    %2 = vector.load %arg4[%c0_4, %c0_5] : memref<3x256xf32, #tpu.memory_space<vmem>>, vector<3x256xf32>
    %cst = arith.constant 0.000000e+00 : f32
    %3 = vector.broadcast %cst : f32 to vector<16x256xf32>
    %cst_6 = arith.constant 0.000000e+00 : f32
    %4 = vector.broadcast %cst_6 : f32 to vector<16x256xf32>
    %c0_7 = arith.constant 0 : index
    %c0_8 = arith.constant 0 : index
    %c0_9 = arith.constant 0 : index
    %5 = vector.load %arg1[%c0_7, %c0_8, %c0_9] : memref<1x4x290xf32, #tpu.memory_space<vmem>>, vector<1x4x256xf32>
    %6 = vector.shape_cast %5 : vector<1x4x256xf32> to vector<4x256xf32>
    %7 = vector.extract_strided_slice %0 {offsets = [0, 0, 0], sizes = [1, 16, 4], strides = [1, 1, 1]} : vector<9x16x4xf32> to vector<1x16x4xf32>
    %8 = vector.shape_cast %7 : vector<1x16x4xf32> to vector<16x4xf32>
    %cst_10 = arith.constant dense<0.000000e+00> : vector<16x256xf32>
    %9 = tpu.matmul %8, %6, %cst_10 {dimension_numbers = #tpu.dot_dimension_numbers<[1], [0], [0], [1], [0, 0, 1, 1], [], []>} : vector<16x4xf32>, vector<4x256xf32>, vector<16x256xf32> -> vector<16x256xf32>
    %10 = arith.addf %4, %9 : vector<16x256xf32>
    %c0_11 = arith.constant 0 : index
    %c0_12 = arith.constant 0 : index
    %c16 = arith.constant 16 : index
    %11 = vector.load %arg1[%c0_11, %c0_12, %c16] : memref<1x4x290xf32, #tpu.memory_space<vmem>>, vector<1x4x256xf32>
    %12 = vector.shape_cast %11 : vector<1x4x256xf32> to vector<4x256xf32>
    %13 = vector.extract_strided_slice %0 {offsets = [3, 0, 0], sizes = [1, 16, 4], strides = [1, 1, 1]} : vector<9x16x4xf32> to vector<1x16x4xf32>
    %14 = vector.shape_cast %13 : vector<1x16x4xf32> to vector<16x4xf32>
    %cst_13 = arith.constant dense<0.000000e+00> : vector<16x256xf32>
    %15 = tpu.matmul %14, %12, %cst_13 {dimension_numbers = #tpu.dot_dimension_numbers<[1], [0], [0], [1], [0, 0, 1, 1], [], []>} : vector<16x4xf32>, vector<4x256xf32>, vector<16x256xf32> -> vector<16x256xf32>
    %16 = arith.addf %10, %15 : vector<16x256xf32>
    %c0_14 = arith.constant 0 : index
    %c0_15 = arith.constant 0 : index
    %c32 = arith.constant 32 : index
    %17 = vector.load %arg1[%c0_14, %c0_15, %c32] : memref<1x4x290xf32, #tpu.memory_space<vmem>>, vector<1x4x256xf32>
    %18 = vector.shape_cast %17 : vector<1x4x256xf32> to vector<4x256xf32>
    %19 = vector.extract_strided_slice %0 {offsets = [6, 0, 0], sizes = [1, 16, 4], strides = [1, 1, 1]} : vector<9x16x4xf32> to vector<1x16x4xf32>
    %20 = vector.shape_cast %19 : vector<1x16x4xf32> to vector<16x4xf32>
    %cst_16 = arith.constant dense<0.000000e+00> : vector<16x256xf32>
    %21 = tpu.matmul %20, %18, %cst_16 {dimension_numbers = #tpu.dot_dimension_numbers<[1], [0], [0], [1], [0, 0, 1, 1], [], []>} : vector<16x4xf32>, vector<4x256xf32>, vector<16x256xf32> -> vector<16x256xf32>
    %22 = arith.addf %16, %21 : vector<16x256xf32>
    %23 = vector.extract_strided_slice %2 {offsets = [0, 0], sizes = [1, 256], strides = [1, 1]} : vector<3x256xf32> to vector<1x256xf32>
    %24 = vector.broadcast %23 : vector<1x256xf32> to vector<16x256xf32>
    %25 = arith.mulf %22, %24 : vector<16x256xf32>
    %26 = arith.addf %3, %25 : vector<16x256xf32>
    %cst_17 = arith.constant 0.000000e+00 : f32
    %27 = vector.broadcast %cst_17 : f32 to vector<16x256xf32>
    %c0_18 = arith.constant 0 : index
    %c0_19 = arith.constant 0 : index
    %c1 = arith.constant 1 : index
    %28 = vector.load %arg1[%c0_18, %c0_19, %c1] : memref<1x4x290xf32, #tpu.memory_space<vmem>>, vector<1x4x256xf32>
    %29 = vector.shape_cast %28 : vector<1x4x256xf32> to vector<4x256xf32>
    %30 = vector.extract_strided_slice %0 {offsets = [1, 0, 0], sizes = [1, 16, 4], strides = [1, 1, 1]} : vector<9x16x4xf32> to vector<1x16x4xf32>
    %31 = vector.shape_cast %30 : vector<1x16x4xf32> to vector<16x4xf32>
    %cst_20 = arith.constant dense<0.000000e+00> : vector<16x256xf32>
    %32 = tpu.matmul %31, %29, %cst_20 {dimension_numbers = #tpu.dot_dimension_numbers<[1], [0], [0], [1], [0, 0, 1, 1], [], []>} : vector<16x4xf32>, vector<4x256xf32>, vector<16x256xf32> -> vector<16x256xf32>
    %33 = arith.addf %27, %32 : vector<16x256xf32>
    %c0_21 = arith.constant 0 : index
    %c0_22 = arith.constant 0 : index
    %c17 = arith.constant 17 : index
    %34 = vector.load %arg1[%c0_21, %c0_22, %c17] : memref<1x4x290xf32, #tpu.memory_space<vmem>>, vector<1x4x256xf32>
    %35 = vector.shape_cast %34 : vector<1x4x256xf32> to vector<4x256xf32>
    %36 = vector.extract_strided_slice %0 {offsets = [4, 0, 0], sizes = [1, 16, 4], strides = [1, 1, 1]} : vector<9x16x4xf32> to vector<1x16x4xf32>
    %37 = vector.shape_cast %36 : vector<1x16x4xf32> to vector<16x4xf32>
    %cst_23 = arith.constant dense<0.000000e+00> : vector<16x256xf32>
    %38 = tpu.matmul %37, %35, %cst_23 {dimension_numbers = #tpu.dot_dimension_numbers<[1], [0], [0], [1], [0, 0, 1, 1], [], []>} : vector<16x4xf32>, vector<4x256xf32>, vector<16x256xf32> -> vector<16x256xf32>
    %39 = arith.addf %33, %38 : vector<16x256xf32>
    %c0_24 = arith.constant 0 : index
    %c0_25 = arith.constant 0 : index
    %c33 = arith.constant 33 : index
    %40 = vector.load %arg1[%c0_24, %c0_25, %c33] : memref<1x4x290xf32, #tpu.memory_space<vmem>>, vector<1x4x256xf32>
    %41 = vector.shape_cast %40 : vector<1x4x256xf32> to vector<4x256xf32>
    %42 = vector.extract_strided_slice %0 {offsets = [7, 0, 0], sizes = [1, 16, 4], strides = [1, 1, 1]} : vector<9x16x4xf32> to vector<1x16x4xf32>
    %43 = vector.shape_cast %42 : vector<1x16x4xf32> to vector<16x4xf32>
    %cst_26 = arith.constant dense<0.000000e+00> : vector<16x256xf32>
    %44 = tpu.matmul %43, %41, %cst_26 {dimension_numbers = #tpu.dot_dimension_numbers<[1], [0], [0], [1], [0, 0, 1, 1], [], []>} : vector<16x4xf32>, vector<4x256xf32>, vector<16x256xf32> -> vector<16x256xf32>
    %45 = arith.addf %39, %44 : vector<16x256xf32>
    %46 = arith.addf %26, %45 : vector<16x256xf32>
    %cst_27 = arith.constant 0.000000e+00 : f32
    %47 = vector.broadcast %cst_27 : f32 to vector<16x256xf32>
    %c0_28 = arith.constant 0 : index
    %c0_29 = arith.constant 0 : index
    %c2 = arith.constant 2 : index
    %48 = vector.load %arg1[%c0_28, %c0_29, %c2] : memref<1x4x290xf32, #tpu.memory_space<vmem>>, vector<1x4x256xf32>
    %49 = vector.shape_cast %48 : vector<1x4x256xf32> to vector<4x256xf32>
    %50 = vector.extract_strided_slice %0 {offsets = [2, 0, 0], sizes = [1, 16, 4], strides = [1, 1, 1]} : vector<9x16x4xf32> to vector<1x16x4xf32>
    %51 = vector.shape_cast %50 : vector<1x16x4xf32> to vector<16x4xf32>
    %cst_30 = arith.constant dense<0.000000e+00> : vector<16x256xf32>
    %52 = tpu.matmul %51, %49, %cst_30 {dimension_numbers = #tpu.dot_dimension_numbers<[1], [0], [0], [1], [0, 0, 1, 1], [], []>} : vector<16x4xf32>, vector<4x256xf32>, vector<16x256xf32> -> vector<16x256xf32>
    %53 = arith.addf %47, %52 : vector<16x256xf32>
    %c0_31 = arith.constant 0 : index
    %c0_32 = arith.constant 0 : index
    %c18 = arith.constant 18 : index
    %54 = vector.load %arg1[%c0_31, %c0_32, %c18] : memref<1x4x290xf32, #tpu.memory_space<vmem>>, vector<1x4x256xf32>
    %55 = vector.shape_cast %54 : vector<1x4x256xf32> to vector<4x256xf32>
    %56 = vector.extract_strided_slice %0 {offsets = [5, 0, 0], sizes = [1, 16, 4], strides = [1, 1, 1]} : vector<9x16x4xf32> to vector<1x16x4xf32>
    %57 = vector.shape_cast %56 : vector<1x16x4xf32> to vector<16x4xf32>
    %cst_33 = arith.constant dense<0.000000e+00> : vector<16x256xf32>
    %58 = tpu.matmul %57, %55, %cst_33 {dimension_numbers = #tpu.dot_dimension_numbers<[1], [0], [0], [1], [0, 0, 1, 1], [], []>} : vector<16x4xf32>, vector<4x256xf32>, vector<16x256xf32> -> vector<16x256xf32>
    %59 = arith.addf %53, %58 : vector<16x256xf32>
    %c0_34 = arith.constant 0 : index
    %c0_35 = arith.constant 0 : index
    %c34 = arith.constant 34 : index
    %60 = vector.load %arg1[%c0_34, %c0_35, %c34] : memref<1x4x290xf32, #tpu.memory_space<vmem>>, vector<1x4x256xf32>
    %61 = vector.shape_cast %60 : vector<1x4x256xf32> to vector<4x256xf32>
    %62 = vector.extract_strided_slice %0 {offsets = [8, 0, 0], sizes = [1, 16, 4], strides = [1, 1, 1]} : vector<9x16x4xf32> to vector<1x16x4xf32>
    %63 = vector.shape_cast %62 : vector<1x16x4xf32> to vector<16x4xf32>
    %cst_36 = arith.constant dense<0.000000e+00> : vector<16x256xf32>
    %64 = tpu.matmul %63, %61, %cst_36 {dimension_numbers = #tpu.dot_dimension_numbers<[1], [0], [0], [1], [0, 0, 1, 1], [], []>} : vector<16x4xf32>, vector<4x256xf32>, vector<16x256xf32> -> vector<16x256xf32>
    %65 = arith.addf %59, %64 : vector<16x256xf32>
    %66 = vector.extract_strided_slice %2 {offsets = [2, 0], sizes = [1, 256], strides = [1, 1]} : vector<3x256xf32> to vector<1x256xf32>
    %67 = vector.broadcast %66 : vector<1x256xf32> to vector<16x256xf32>
    %68 = arith.mulf %65, %67 : vector<16x256xf32>
    %69 = arith.addf %46, %68 : vector<16x256xf32>
    %70 = vector.broadcast %1 : vector<16x1xf32> to vector<16x256xf32>
    %71 = arith.addf %69, %70 : vector<16x256xf32>
    %cst_37 = arith.constant 0.000000e+00 : f32
    %72 = vector.broadcast %cst_37 : f32 to vector<16x256xf32>
    %73 = arith.maximumf %71, %72 : vector<16x256xf32>
    %c0_38 = arith.constant 0 : index
    %c0_39 = arith.constant 0 : index
    %c0_40 = arith.constant 0 : index
    %74 = vector.load %arg5[%c0_38, %c0_39, %c0_40] : memref<1x16x256xf32, #tpu.memory_space<vmem>>, vector<1x16x256xf32>
    %75 = vector.shape_cast %74 : vector<1x16x256xf32> to vector<16x256xf32>
    %76 = vector.shape_cast %73 : vector<16x256xf32> to vector<1x16x256xf32>
    tpu.vector_store %arg5[%c0_38, %c0_39, %c0_40], %76 {strides = array<i32>} : memref<1x16x256xf32, #tpu.memory_space<vmem>>, vector<1x16x256xf32>,
    return
  }
  func.func @transform_0(%arg0: i32) -> (i32, i32, i32) {
    %c0_i32 = arith.constant 0 : i32
    %c0_i32_0 = arith.constant 0 : i32
    %c0_i32_1 = arith.constant 0 : i32
    return %arg0, %c0_i32, %c0_i32_0 : i32, i32, i32
  }
  func.func @transform_1(%arg0: i32) -> (i32, i32, i32) {
    %c0_i32 = arith.constant 0 : i32
    %c0_i32_0 = arith.constant 0 : i32
    %c0_i32_1 = arith.constant 0 : i32
    %c0_i32_2 = arith.constant 0 : i32
    return %c0_i32, %c0_i32_0, %c0_i32_1 : i32, i32, i32
  }
  func.func @transform_2(%arg0: i32) -> (i32, i32) {
    %c0_i32 = arith.constant 0 : i32
    %c0_i32_0 = arith.constant 0 : i32
    %c0_i32_1 = arith.constant 0 : i32
    return %c0_i32, %c0_i32_0 : i32, i32
  }
  func.func @transform_3(%arg0: i32) -> (i32, i32) {
    %c0_i32 = arith.constant 0 : i32
    %c0_i32_0 = arith.constant 0 : i32
    %c0_i32_1 = arith.constant 0 : i32
    return %c0_i32, %c0_i32_0 : i32, i32
  }
  func.func @transform_4(%arg0: i32) -> (i32, i32, i32) {
    %c0_i32 = arith.constant 0 : i32
    %c0_i32_0 = arith.constant 0 : i32
    %c0_i32_1 = arith.constant 0 : i32
    return %arg0, %c0_i32, %c0_i32_0 : i32, i32, i32
  }
}

</mosaic_0001>

<llo_original>
// kernel: tpu_custom_call.1
$region0: #{tpu_custom_call.1}
  #allocation0 [shape = 'u32[]', space=smem, size = 0x4, offset = 0x4, fixed_abs, tag = 'smem constant byte address 0x4 - core index']
  #allocation1 [shape = 'u32[72,128]{1,0:T(1,128)}', space=vmem, size = 0x9000, scoped, tag = 'internal scratch']
  %s0 = inlined_call_operand.vmem [shape: f32[2,4,290], index: 0, kind: input, shape index: {}]
  %s1 = inlined_call_operand.vmem [shape: f32[9,16,4], index: 1, kind: input, shape index: {}]
  %s2 = inlined_call_operand.vmem [shape: f32[16,1], index: 2, kind: input, shape index: {}]
  %s3 = inlined_call_operand.vmem [shape: f32[3,256], index: 3, kind: input, shape index: {}]
  %s4 = inlined_call_operand.hbm [shape: f32[2,16,256], index: 4, kind: output, shape index: {}]
  %s5 = sld [smem:[#allocation0]]
  $region49: #{tpu_custom_call.1} parent=0
    _
  %s7 = ssub.s32 1, %s5
  %s8 = scalar_select 0, %s7, %s5
  $region1: #{tpu_custom_call.1} parent=0
    #allocation2 [shape = 'u8[32768]{0}', space=vmem, size = 0x8000, scoped, tag = 'output window, operand 0']
    #allocation3 [shape = 's32[2]{0}', space=sflag, size = 0x8, scoped, tag = 'scoped memory for tpu_custom_call.1']
    %9 = vsyncpa [#allocation3], 0
    %s10 = scalar_lea.sflag [#allocation3], 1
    %11 = vsyncpa %s10, 0
    loop: start=0, step=1, limit=4
    $region2: #{tpu_custom_call.1} parent=1 // loop_pre_header
      _
    $region3: #{tpu_custom_call.1} parent=1 // loop_header
      %s13 = sphi 0, %s17
      %p14 = scmp.ge.s32.totalorder %s13, 4
      %s23 = sphi 0, %s25
      %s26 = sphi 0, %s23
      %s27 = sphi 0, %s26
      %s43 = sphi 0, %s27
      %s47 = sphi 0, %s47
      %s49 = sphi 0, %s47
      %s50 = sphi 0, %s49
      %s64 = sphi 0, %s50
      %s68 = sphi 0, %s68
      %s70 = sphi 0, %s68
      %s71 = sphi 0, %s70
      %s85 = sphi 0, %s71
      %s89 = sphi 0, %s89
      %s91 = sphi 0, %s89
      %s92 = sphi 0, %s91
      %s106 = sphi 0, %s92
      %s112 = sphi 0, %s114
      %s115 = sphi 0, %s112
      %s116 = sphi 0, %s115
      %s132 = sphi 0, %s116
    $region4: #{tpu_custom_call.1} parent=1 // loop_header_branch
      %16 = sbr.rel (%p14) target = $region8
    $region5: #{tpu_custom_call.1} parent=1 // loop_body
      %s18 = ssub.s32 %s13, 1
      %s19 = ssub.s32 %s13, 2
      %s20 = sadd.s32 %s13, 1
      %s21 = ssub.s32 %s13, %s20
      %p22 = scmp.eq.s32.totalorder %s21, 0
      %s24 = sadd.s32 %s23, 1
      %s25 = scalar_select %p22, %s23, %s24
      %p28 = pneg %p22
      %p29 = scmp.eq.s32.totalorder %s13, 1
      %p30 = por %p28, %p29
      %p31 = scmp.ne.s32.totalorder %s23, %s26
      %p32 = scmp.eq.s32.totalorder %s13, 0
      %p33 = por %p31, %p32
      %p34 = scmp.ne.s32.totalorder %s23, %s26
      %p35 = scmp.eq.s32.totalorder %s18, 1
      %p36 = por %p34, %p35
      %p37 = scmp.ne.s32.totalorder %s26, %s27
      %p38 = scmp.eq.s32.totalorder %s18, 0
      %p39 = por %p37, %p38
      %p40 = scmp.ne.s32.totalorder %s26, %s27
      %p41 = scmp.eq.s32.totalorder %s19, 1
      %p42 = por %p40, %p41
      %p44 = scmp.ne.s32.totalorder %s27, %s43
      %p45 = scmp.eq.s32.totalorder %s19, 0
      %p46 = por %p44, %p45
      %s48 = sadd.s32 %s47, 1
      %p51 = scmp.eq.s32.totalorder %s13, 1
      %p52 = scmp.ne.s32.totalorder %s47, %s49
      %p53 = scmp.eq.s32.totalorder %s13, 0
      %p54 = por %p52, %p53
      %p55 = scmp.ne.s32.totalorder %s47, %s49
      %p56 = scmp.eq.s32.totalorder %s18, 1
      %p57 = por %p55, %p56
      %p58 = scmp.ne.s32.totalorder %s49, %s50
      %p59 = scmp.eq.s32.totalorder %s18, 0
      %p60 = por %p58, %p59
      %p61 = scmp.ne.s32.totalorder %s49, %s50
      %p62 = scmp.eq.s32.totalorder %s19, 1
      %p63 = por %p61, %p62
      %p65 = scmp.ne.s32.totalorder %s50, %s64
      %p66 = scmp.eq.s32.totalorder %s19, 0
      %p67 = por %p65, %p66
      %s69 = sadd.s32 %s68, 1
      %p72 = scmp.eq.s32.totalorder %s13, 1
      %p73 = scmp.ne.s32.totalorder %s68, %s70
      %p74 = scmp.eq.s32.totalorder %s13, 0
      %p75 = por %p73, %p74
      %p76 = scmp.ne.s32.totalorder %s68, %s70
      %p77 = scmp.eq.s32.totalorder %s18, 1
      %p78 = por %p76, %p77
      %p79 = scmp.ne.s32.totalorder %s70, %s71
      %p80 = scmp.eq.s32.totalorder %s18, 0
      %p81 = por %p79, %p80
      %p82 = scmp.ne.s32.totalorder %s70, %s71
      %p83 = scmp.eq.s32.totalorder %s19, 1
      %p84 = por %p82, %p83
      %p86 = scmp.ne.s32.totalorder %s71, %s85
      %p87 = scmp.eq.s32.totalorder %s19, 0
      %p88 = por %p86, %p87
      %s90 = sadd.s32 %s89, 1
      %p93 = scmp.eq.s32.totalorder %s13, 1
      %p94 = scmp.ne.s32.totalorder %s89, %s91
      %p95 = scmp.eq.s32.totalorder %s13, 0
      %p96 = por %p94, %p95
      %p97 = scmp.ne.s32.totalorder %s89, %s91
      %p98 = scmp.eq.s32.totalorder %s18, 1
      %p99 = por %p97, %p98
      %p100 = scmp.ne.s32.totalorder %s91, %s92
      %p101 = scmp.eq.s32.totalorder %s18, 0
      %p102 = por %p100, %p101
      %p103 = scmp.ne.s32.totalorder %s91, %s92
      %p104 = scmp.eq.s32.totalorder %s19, 1
      %p105 = por %p103, %p104
      %p107 = scmp.ne.s32.totalorder %s92, %s106
      %p108 = scmp.eq.s32.totalorder %s19, 0
      %p109 = por %p107, %p108
      %s110 = ssub.s32 %s13, %s20
      %p111 = scmp.eq.s32.totalorder %s110, 0
      %s113 = sadd.s32 %s112, 1
      %s114 = scalar_select %p111, %s112, %s113
      %p117 = pneg %p111
      %p118 = scmp.eq.s32.totalorder %s13, 1
      %p119 = por %p117, %p118
      %p120 = scmp.ne.s32.totalorder %s112, %s115
      %p121 = scmp.eq.s32.totalorder %s13, 0
      %p122 = por %p120, %p121
      %p123 = scmp.ne.s32.totalorder %s112, %s115
      %p124 = scmp.eq.s32.totalorder %s18, 1
      %p125 = por %p123, %p124
      %p126 = scmp.ne.s32.totalorder %s115, %s116
      %p127 = scmp.eq.s32.totalorder %s18, 0
      %p128 = por %p126, %p127
      %p129 = scmp.ne.s32.totalorder %s115, %s116
      %p130 = scmp.eq.s32.totalorder %s19, 1
      %p131 = por %p129, %p130
      %p133 = scmp.ne.s32.totalorder %s116, %s132
      %p134 = scmp.eq.s32.totalorder %s19, 0
      %p135 = por %p133, %p134
      %p136 = scmp.le.s32.totalorder 1, %s13
      %p137 = scmp.lt.s32.totalorder %s13, 3
      %p138 = pnand %p136, %p137
      %p139 = pneg %p138
      // Predicated region
      $region9: #{tpu_custom_call.1} parent=5 // pred_check
        _
      $region10: #{tpu_custom_call.1} parent=5 // pred_check_branch
        %141 = sbr.rel (%p138) target = $region12
      $region11: #{tpu_custom_call.1} parent=5 // pred_region
        %s142 = ssub.s32 %s13, 1
        // Predicated region
        $region13: #{tpu_custom_call.1} parent=11 // pred_check
          %p143 = pneg %p60
        $region14: #{tpu_custom_call.1} parent=11 // pred_check_branch
          %145 = sbr.rel (%p143) target = $region16
        $region15: #{tpu_custom_call.1} parent=11 // pred_region
          _
        $region16: #{tpu_custom_call.1} parent=11 // pred_fallthru
          _
        // Predicated region
        $region17: #{tpu_custom_call.1} parent=11 // pred_check
          %p146 = pneg %p81
        $region18: #{tpu_custom_call.1} parent=11 // pred_check_branch
          %148 = sbr.rel (%p146) target = $region20
        $region19: #{tpu_custom_call.1} parent=11 // pred_region
          _
        $region20: #{tpu_custom_call.1} parent=11 // pred_fallthru
          _
        // Predicated region
        $region21: #{tpu_custom_call.1} parent=11 // pred_check
          %p149 = pneg %p102
        $region22: #{tpu_custom_call.1} parent=11 // pred_check_branch
          %151 = sbr.rel (%p149) target = $region24
        $region23: #{tpu_custom_call.1} parent=11 // pred_region
          _
        $region24: #{tpu_custom_call.1} parent=11 // pred_fallthru
          _
      $region12: #{tpu_custom_call.1} parent=5 // pred_fallthru
        _
      %p152 = scmp.lt.s32.totalorder %s13, 2
      // Predicated region
      $region25: #{tpu_custom_call.1} parent=5 // pred_check
        %p153 = pneg %p152
      $region26: #{tpu_custom_call.1} parent=5 // pred_check_branch
        %155 = sbr.rel (%p153) target = $region28
      $region27: #{tpu_custom_call.1} parent=5 // pred_region
        // Predicated region
        $region29: #{tpu_custom_call.1} parent=27 // pred_check
          %p156 = pneg %p33
        $region30: #{tpu_custom_call.1} parent=27 // pred_check_branch
          %158 = sbr.rel (%p156) target = $region32
        $region31: #{tpu_custom_call.1} parent=27 // pred_region
          %p159 = scmp.lt.s32.totalorder %s13, 1
          %s160 = scalar_select %p159, %s13, 1
          %s161 = smul.addr %s160, 3
          %s162 = smul.addr %s161, 4
          %s163 = scalar_lea.vmem %s0, %s162
        $region32: #{tpu_custom_call.1} parent=27 // pred_fallthru
          _
      $region28: #{tpu_custom_call.1} parent=5 // pred_fallthru
        _
      %p164 = scmp.le.s32.totalorder 1, %s13
      %p165 = scmp.lt.s32.totalorder %s13, 3
      %p166 = pnand %p164, %p165
      %p167 = pneg %p166
      // Predicated region
      $region33: #{tpu_custom_call.1} parent=5 // pred_check
        _
      $region34: #{tpu_custom_call.1} parent=5 // pred_check_branch
        %169 = sbr.rel (%p166) target = $region36
      $region35: #{tpu_custom_call.1} parent=5 // pred_region
        %s170 = ssub.s32 %s13, 1
        %p171 = scmp.lt.s32.totalorder %s18, 1
        %s172 = scalar_select %p171, %s18, 1
        %s173 = smul.addr %s172, 3
        %s174 = smul.addr %s173, 4
        %s175 = scalar_lea.vmem %s0, %s174
        %p176 = pneg %p39
        %p177 = pneg %p36
        %p178 = pneg %p60
        %p179 = pneg %p57
        %p180 = pneg %p81
        %p181 = pneg %p78
        %p182 = pneg %p102
        %p183 = pneg %p99
        %p184 = pneg %p128
        %p185 = pneg %p125
        %s186 = sand.u32 %s115, 1
        %s187 = scalar_lea.sflag [#allocation3], %s186
        %s188 = sand.u32 %s115, 1
        %s189 = smul.addr %s188, 32
        %s190 = scalar_lea.vmem [#allocation2], %s189
        %p191 = scmp.lt.s32.totalorder %s18, 1
        %s192 = scalar_select %p191, %s18, 1
        %s193 = smul.addr %s192, 3
        %s194 = smul.addr %s193, 4
        %s195 = scalar_lea.vmem %s0, %s194
        %v196 = vld [vmem:[%s1] sm:$0xff]
        %v197 = vld [vmem:[%s1 + $0x8] sm:$0xff]
        %v198 = vld [vmem:[%s1 + $0x10] sm:$0xff]
        %v199 = vld [vmem:[%s1 + $0x18] sm:$0xff]
        %v200 = vld [vmem:[%s1 + $0x20] sm:$0xff]
        %v201 = vld [vmem:[%s1 + $0x28] sm:$0xff]
        %v202 = vld [vmem:[%s1 + $0x30] sm:$0xff]
        %v203 = vld [vmem:[%s1 + $0x38] sm:$0xff]
        %v204 = vld [vmem:[%s1 + $0x40] sm:$0xff]
        %v205 = vld [vmem:[%s1 + $0x48] sm:$0xff]
        %v206 = vld [vmem:[%s1 + $0x50] sm:$0xff]
        %v207 = vld [vmem:[%s1 + $0x58] sm:$0xff]
        %v208 = vld [vmem:[%s1 + $0x60] sm:$0xff]
        %v209 = vld [vmem:[%s1 + $0x68] sm:$0xff]
        %v210 = vld [vmem:[%s1 + $0x70] sm:$0xff]
        %v211 = vld [vmem:[%s1 + $0x78] sm:$0xff]
        %v212 = vld [vmem:[%s1 + $0x80] sm:$0xff]
        %v213 = vld [vmem:[%s1 + $0x88] sm:$0xff]
        %v214 = vld [vmem:[%s2] sm:$0xff]
        %v215 = vld [vmem:[%s2 + $0x8] sm:$0xff]
        %v216 = vld [vmem:[%s3] sm:$0x77]
        %v217 = vld [vmem:[%s195] sm:$0xff]
        %v218 = vld [vmem:[%s195 + $0x8] sm:$0xf]
        %221 = vst [vmem:[#allocation1] ss:$2 sm:$0xff] %v217
        %s222 = scalar_lea.vmem [#allocation1], 16
        %223 = vst [vmem:[%s222] ss:$2 sm:$0xff] %v218
        %v224 = vld.sshfl [vmem:[#allocation1] sm:$0xff pattern:$0x75316420]
        %v225 = vld.sshfl [vmem:[#allocation1 + $0x8] sm:$0xff pattern:$0x75316420]
        %v226 = vld.sshfl [vmem:[#allocation1 + $0x10] sm:$0xff pattern:$0x75316420]
        %227 = vrot.lane.b32.xlu0 %v224, 112
        %v228 = vpop.permute.xlu0 %227
        %229 = vrot.lane.b32.xlu0 %v225, 112
        %v230 = vpop.permute.xlu0 %229
        %231 = vrot.lane.b32.xlu0 %v226, 112
        %v232 = vpop.permute.xlu0 %231
        %vm233 = vcmask 916480
        %v234 = vsel %vm233, %v228, %v230
        %v235 = vsel %vm233, %v230, %v232
        %vm236 = vcmask 31744
        %v238 = vsel %vm236, %v202, 0
        %v241 = vsel %vm236, %v203, 0
        %vm243 = vcmask 1043456
        %v244 = vsel %vm243, %v234, 0
        %v246 = vsel %vm243, %v235, 0
        %248 = vmatpush.msra.mxu0 0.0
        %249 = vmatpush.msra.mxu0 0.0
        %250 = vmatpush.msra.mxu0 0.0
        %251 = vmatpush.msra.mxu0 0.0
        %252 = vmatpush.msra.mxu0 0.0
        %253 = vmatpush.msra.mxu0 0.0
        %254 = vmatpush.msra.mxu0 0.0
        %255 = vmatpush.msra.mxu0 0.0
        %256 = vmatpush.msra.mxu0 0.0
        %257 = vmatpush.msra.mxu0 0.0
        %258 = vmatpush.msra.mxu0 0.0
        %259 = vmatpush.msra.mxu0 0.0
        %260 = vmatpush.msra.mxu0 0.0
        %261 = vmatpush.msra.mxu0 0.0
        %262 = vmatpush.msra.mxu0 0.0
        %263 = vmatpush.msra.mxu0 %v244
        %264 = vmatmul.f32.gmra.mxu0 %v238
        %v265 = vpop.f32.mrf.mxu0
        %v266 = vadd.f32 0.0, %v265
        %267 = vmatmul.f32.gmra.mxu0 %v241
        %v268 = vpop.f32.mrf.mxu0
        %v269 = vadd.f32 0.0, %v268
        %270 = vdwg.mxu0
        %271 = vmatpush.msra.mxu0 0.0
        %272 = vmatpush.msra.mxu0 0.0
        %273 = vmatpush.msra.mxu0 0.0
        %274 = vmatpush.msra.mxu0 0.0
        %275 = vmatpush.msra.mxu0 0.0
        %276 = vmatpush.msra.mxu0 0.0
        %277 = vmatpush.msra.mxu0 0.0
        %278 = vmatpush.msra.mxu0 0.0
        %279 = vmatpush.msra.mxu0 0.0
        %280 = vmatpush.msra.mxu0 0.0
        %281 = vmatpush.msra.mxu0 0.0
        %282 = vmatpush.msra.mxu0 0.0
        %283 = vmatpush.msra.mxu0 0.0
        %284 = vmatpush.msra.mxu0 0.0
        %285 = vmatpush.msra.mxu0 0.0
        %286 = vmatpush.msra.mxu0 %v246
        %287 = vmatmul.f32.gmra.mxu0 %v238
        %v288 = vpop.f32.mrf.mxu0
        %v289 = vadd.f32 0.0, %v288
        %290 = vmatmul.f32.gmra.mxu0 %v241
        %v291 = vpop.f32.mrf.mxu0
        %v292 = vadd.f32 0.0, %v291
        %293 = vdwg.mxu0
        %294 = vst [vmem:[#allocation1] ss:$2 sm:$0xff] %v217
        %v295 = vld.sshfl [vmem:[#allocation1] sm:$0xff pattern:$0x75316420]
        %v296 = vld.sshfl [vmem:[#allocation1 + $0x8] sm:$0xff pattern:$0x75316420]
        %v298 = vsel %vm236, %v196, 0
        %v301 = vsel %vm236, %v197, 0
        %v303 = vsel %vm243, %v295, 0
        %v305 = vsel %vm243, %v296, 0
        %307 = vmatpush.msra.mxu0 0.0
        %308 = vmatpush.msra.mxu0 0.0
        %309 = vmatpush.msra.mxu0 0.0
        %310 = vmatpush.msra.mxu0 0.0
        %311 = vmatpush.msra.mxu0 0.0
        %312 = vmatpush.msra.mxu0 0.0
        %313 = vmatpush.msra.mxu0 0.0
        %314 = vmatpush.msra.mxu0 0.0
        %315 = vmatpush.msra.mxu0 0.0
        %316 = vmatpush.msra.mxu0 0.0
        %317 = vmatpush.msra.mxu0 0.0
        %318 = vmatpush.msra.mxu0 0.0
        %319 = vmatpush.msra.mxu0 0.0
        %320 = vmatpush.msra.mxu0 0.0
        %321 = vmatpush.msra.mxu0 0.0
        %322 = vmatpush.msra.mxu0 %v303
        %323 = vmatmul.f32.gmra.mxu0 %v298
        %v324 = vpop.f32.mrf.mxu0
        %v325 = vadd.f32 %v266, %v324
        %326 = vmatmul.f32.gmra.mxu0 %v301
        %v327 = vpop.f32.mrf.mxu0
        %v328 = vadd.f32 %v269, %v327
        %329 = vdwg.mxu0
        %330 = vmatpush.msra.mxu0 0.0
        %331 = vmatpush.msra.mxu0 0.0
        %332 = vmatpush.msra.mxu0 0.0
        %333 = vmatpush.msra.mxu0 0.0
        %334 = vmatpush.msra.mxu0 0.0
        %335 = vmatpush.msra.mxu0 0.0
        %336 = vmatpush.msra.mxu0 0.0
        %337 = vmatpush.msra.mxu0 0.0
        %338 = vmatpush.msra.mxu0 0.0
        %339 = vmatpush.msra.mxu0 0.0
        %340 = vmatpush.msra.mxu0 0.0
        %341 = vmatpush.msra.mxu0 0.0
        %342 = vmatpush.msra.mxu0 0.0
        %343 = vmatpush.msra.mxu0 0.0
        %344 = vmatpush.msra.mxu0 0.0
        %345 = vmatpush.msra.mxu0 %v305
        %346 = vmatmul.f32.gmra.mxu0 %v298
        %v347 = vpop.f32.mrf.mxu0
        %v348 = vadd.f32 %v289, %v347
        %349 = vmatmul.f32.gmra.mxu0 %v301
        %v350 = vpop.f32.mrf.mxu0
        %v351 = vadd.f32 %v292, %v350
        %352 = vdwg.mxu0
        %v353 = vld [vmem:[%s195] sm:$0xff]
        %v354 = vld [vmem:[%s195 + $0x8] sm:$0xf]
        %357 = vst [vmem:[#allocation1] ss:$2 sm:$0xff] %v353
        %s358 = scalar_lea.vmem [#allocation1], 16
        %359 = vst [vmem:[%s358] ss:$2 sm:$0xff] %v354
        %v360 = vld.sshfl [vmem:[#allocation1] sm:$0xff pattern:$0x75316420]
        %v361 = vld.sshfl [vmem:[#allocation1 + $0x8] sm:$0xff pattern:$0x75316420]
        %v362 = vld.sshfl [vmem:[#allocation1 + $0x10] sm:$0xff pattern:$0x75316420]
        %363 = vrot.lane.b32.xlu0 %v360, 96
        %v364 = vpop.permute.xlu0 %363
        %365 = vrot.lane.b32.xlu0 %v361, 96
        %v366 = vpop.permute.xlu0 %365
        %367 = vrot.lane.b32.xlu0 %v362, 96
        %v368 = vpop.permute.xlu0 %367
        %vm369 = vcmask 785408
        %v370 = vsel %vm369, %v364, %v366
        %v371 = vsel %vm369, %v366, %v368
        %v373 = vsel %vm236, %v208, 0
        %v376 = vsel %vm236, %v209, 0
        %v378 = vsel %vm243, %v370, 0
        %v380 = vsel %vm243, %v371, 0
        %382 = vmatpush.msra.mxu0 0.0
        %383 = vmatpush.msra.mxu0 0.0
        %384 = vmatpush.msra.mxu0 0.0
        %385 = vmatpush.msra.mxu0 0.0
        %386 = vmatpush.msra.mxu0 0.0
        %387 = vmatpush.msra.mxu0 0.0
        %388 = vmatpush.msra.mxu0 0.0
        %389 = vmatpush.msra.mxu0 0.0
        %390 = vmatpush.msra.mxu0 0.0
        %391 = vmatpush.msra.mxu0 0.0
        %392 = vmatpush.msra.mxu0 0.0
        %393 = vmatpush.msra.mxu0 0.0
        %394 = vmatpush.msra.mxu0 0.0
        %395 = vmatpush.msra.mxu0 0.0
        %396 = vmatpush.msra.mxu0 0.0
        %397 = vmatpush.msra.mxu0 %v378
        %398 = vmatmul.f32.gmra.mxu0 %v373
        %v399 = vpop.f32.mrf.mxu0
        %v400 = vadd.f32 0.0, %v399
        %401 = vmatmul.f32.gmra.mxu0 %v376
        %v402 = vpop.f32.mrf.mxu0
        %v403 = vadd.f32 0.0, %v402
        %404 = vdwg.mxu0
        %405 = vmatpush.msra.mxu0 0.0
        %406 = vmatpush.msra.mxu0 0.0
        %407 = vmatpush.msra.mxu0 0.0
        %408 = vmatpush.msra.mxu0 0.0
        %409 = vmatpush.msra.mxu0 0.0
        %410 = vmatpush.msra.mxu0 0.0
        %411 = vmatpush.msra.mxu0 0.0
        %412 = vmatpush.msra.mxu0 0.0
        %413 = vmatpush.msra.mxu0 0.0
        %414 = vmatpush.msra.mxu0 0.0
        %415 = vmatpush.msra.mxu0 0.0
        %416 = vmatpush.msra.mxu0 0.0
        %417 = vmatpush.msra.mxu0 0.0
        %418 = vmatpush.msra.mxu0 0.0
        %419 = vmatpush.msra.mxu0 0.0
        %420 = vmatpush.msra.mxu0 %v380
        %421 = vmatmul.f32.gmra.mxu0 %v373
        %v422 = vpop.f32.mrf.mxu0
        %v423 = vadd.f32 0.0, %v422
        %424 = vmatmul.f32.gmra.mxu0 %v376
        %v425 = vpop.f32.mrf.mxu0
        %v426 = vadd.f32 0.0, %v425
        %427 = vdwg.mxu0
        %v428 = vadd.f32 %v325, %v400
        %v429 = vadd.f32 %v348, %v423
        %v430 = vadd.f32 %v328, %v403
        %v431 = vadd.f32 %v351, %v426
        %v433 = vperm.slane %v216, 0
        %v434 = vperm.slane %v216, 4
        %v437 = vperm.slane %v433, 0
        %v438 = vperm.slane %v434, 0
        %v439 = vmul.f32 %v428, %v437
        %v440 = vmul.f32 %v429, %v438
        %v441 = vmul.f32 %v430, %v437
        %v442 = vmul.f32 %v431, %v438
        %v443 = vadd.f32 %v439, 0.0
        %v444 = vadd.f32 %v440, 0.0
        %v445 = vadd.f32 %v441, 0.0
        %v446 = vadd.f32 %v442, 0.0
        %v447 = vld [vmem:[%s195] sm:$0xff]
        %v448 = vld [vmem:[%s195 + $0x8] sm:$0xf]
        %451 = vst [vmem:[#allocation1] ss:$2 sm:$0xff] %v447
        %s452 = scalar_lea.vmem [#allocation1], 16
        %453 = vst [vmem:[%s452] ss:$2 sm:$0xff] %v448
        %v454 = vld.sshfl [vmem:[#allocation1] sm:$0xff pattern:$0x75316420]
        %v455 = vld.sshfl [vmem:[#allocation1 + $0x8] sm:$0xff pattern:$0x75316420]
        %v456 = vld.sshfl [vmem:[#allocation1 + $0x10] sm:$0xff pattern:$0x75316420]
        %457 = vrot.lane.b32.xlu0 %v454, 111
        %v458 = vpop.permute.xlu0 %457
        %459 = vrot.lane.b32.xlu0 %v455, 111
        %v460 = vpop.permute.xlu0 %459
        %461 = vrot.lane.b32.xlu0 %v456, 111
        %v462 = vpop.permute.xlu0 %461
        %vm463 = vcmask 908288
        %v464 = vsel %vm463, %v458, %v460
        %v465 = vsel %vm463, %v460, %v462
        %v467 = vsel %vm236, %v204, 0
        %v470 = vsel %vm236, %v205, 0
        %v472 = vsel %vm243, %v464, 0
        %v474 = vsel %vm243, %v465, 0
        %476 = vmatpush.msra.mxu0 0.0
        %477 = vmatpush.msra.mxu0 0.0
        %478 = vmatpush.msra.mxu0 0.0
        %479 = vmatpush.msra.mxu0 0.0
        %480 = vmatpush.msra.mxu0 0.0
        %481 = vmatpush.msra.mxu0 0.0
        %482 = vmatpush.msra.mxu0 0.0
        %483 = vmatpush.msra.mxu0 0.0
        %484 = vmatpush.msra.mxu0 0.0
        %485 = vmatpush.msra.mxu0 0.0
        %486 = vmatpush.msra.mxu0 0.0
        %487 = vmatpush.msra.mxu0 0.0
        %488 = vmatpush.msra.mxu0 0.0
        %489 = vmatpush.msra.mxu0 0.0
        %490 = vmatpush.msra.mxu0 0.0
        %491 = vmatpush.msra.mxu0 %v472
        %492 = vmatmul.f32.gmra.mxu0 %v467
        %v493 = vpop.f32.mrf.mxu0
        %v494 = vadd.f32 0.0, %v493
        %495 = vmatmul.f32.gmra.mxu0 %v470
        %v496 = vpop.f32.mrf.mxu0
        %v497 = vadd.f32 0.0, %v496
        %498 = vdwg.mxu0
        %499 = vmatpush.msra.mxu0 0.0
        %500 = vmatpush.msra.mxu0 0.0
        %501 = vmatpush.msra.mxu0 0.0
        %502 = vmatpush.msra.mxu0 0.0
        %503 = vmatpush.msra.mxu0 0.0
        %504 = vmatpush.msra.mxu0 0.0
        %505 = vmatpush.msra.mxu0 0.0
        %506 = vmatpush.msra.mxu0 0.0
        %507 = vmatpush.msra.mxu0 0.0
        %508 = vmatpush.msra.mxu0 0.0
        %509 = vmatpush.msra.mxu0 0.0
        %510 = vmatpush.msra.mxu0 0.0
        %511 = vmatpush.msra.mxu0 0.0
        %512 = vmatpush.msra.mxu0 0.0
        %513 = vmatpush.msra.mxu0 0.0
        %514 = vmatpush.msra.mxu0 %v474
        %515 = vmatmul.f32.gmra.mxu0 %v467
        %v516 = vpop.f32.mrf.mxu0
        %v517 = vadd.f32 0.0, %v516
        %518 = vmatmul.f32.gmra.mxu0 %v470
        %v519 = vpop.f32.mrf.mxu0
        %v520 = vadd.f32 0.0, %v519
        %521 = vdwg.mxu0
        %522 = vst [vmem:[#allocation1] ss:$2 sm:$0xff] %v447
        %s523 = scalar_lea.vmem [#allocation1], 16
        %524 = vst [vmem:[%s523] ss:$2 sm:$0xff] %v448
        %v525 = vld.sshfl [vmem:[#allocation1] sm:$0xff pattern:$0x75316420]
        %v526 = vld.sshfl [vmem:[#allocation1 + $0x8] sm:$0xff pattern:$0x75316420]
        %v527 = vld.sshfl [vmem:[#allocation1 + $0x10] sm:$0xff pattern:$0x75316420]
        %528 = vrot.lane.b32.xlu0 %v525, 127
        %v529 = vpop.permute.xlu0 %528
        %530 = vrot.lane.b32.xlu0 %v526, 127
        %v531 = vpop.permute.xlu0 %530
        %532 = vrot.lane.b32.xlu0 %v527, 127
        %v533 = vpop.permute.xlu0 %532
        %vm534 = vcmask 1039360
        %v535 = vsel %vm534, %v529, %v531
        %v536 = vsel %vm534, %v531, %v533
        %v538 = vsel %vm236, %v198, 0
        %v541 = vsel %vm236, %v199, 0
        %v543 = vsel %vm243, %v535, 0
        %v545 = vsel %vm243, %v536, 0
        %547 = vmatpush.msra.mxu0 0.0
        %548 = vmatpush.msra.mxu0 0.0
        %549 = vmatpush.msra.mxu0 0.0
        %550 = vmatpush.msra.mxu0 0.0
        %551 = vmatpush.msra.mxu0 0.0
        %552 = vmatpush.msra.mxu0 0.0
        %553 = vmatpush.msra.mxu0 0.0
        %554 = vmatpush.msra.mxu0 0.0
        %555 = vmatpush.msra.mxu0 0.0
        %556 = vmatpush.msra.mxu0 0.0
        %557 = vmatpush.msra.mxu0 0.0
        %558 = vmatpush.msra.mxu0 0.0
        %559 = vmatpush.msra.mxu0 0.0
        %560 = vmatpush.msra.mxu0 0.0
        %561 = vmatpush.msra.mxu0 0.0
        %562 = vmatpush.msra.mxu0 %v543
        %563 = vmatmul.f32.gmra.mxu0 %v538
        %v564 = vpop.f32.mrf.mxu0
        %v565 = vadd.f32 %v494, %v564
        %566 = vmatmul.f32.gmra.mxu0 %v541
        %v567 = vpop.f32.mrf.mxu0
        %v568 = vadd.f32 %v497, %v567
        %569 = vdwg.mxu0
        %570 = vmatpush.msra.mxu0 0.0
        %571 = vmatpush.msra.mxu0 0.0
        %572 = vmatpush.msra.mxu0 0.0
        %573 = vmatpush.msra.mxu0 0.0
        %574 = vmatpush.msra.mxu0 0.0
        %575 = vmatpush.msra.mxu0 0.0
        %576 = vmatpush.msra.mxu0 0.0
        %577 = vmatpush.msra.mxu0 0.0
        %578 = vmatpush.msra.mxu0 0.0
        %579 = vmatpush.msra.mxu0 0.0
        %580 = vmatpush.msra.mxu0 0.0
        %581 = vmatpush.msra.mxu0 0.0
        %582 = vmatpush.msra.mxu0 0.0
        %583 = vmatpush.msra.mxu0 0.0
        %584 = vmatpush.msra.mxu0 0.0
        %585 = vmatpush.msra.mxu0 %v545
        %586 = vmatmul.f32.gmra.mxu0 %v538
        %v587 = vpop.f32.mrf.mxu0
        %v588 = vadd.f32 %v517, %v587
        %589 = vmatmul.f32.gmra.mxu0 %v541
        %v590 = vpop.f32.mrf.mxu0
        %v591 = vadd.f32 %v520, %v590
        %592 = vdwg.mxu0
        %v593 = vld [vmem:[%s195] sm:$0xff]
        %v594 = vld [vmem:[%s195 + $0x8] sm:$0xf]
        %597 = vst [vmem:[#allocation1] ss:$2 sm:$0xff] %v593
        %s598 = scalar_lea.vmem [#allocation1], 16
        %599 = vst [vmem:[%s598] ss:$2 sm:$0xff] %v594
        %v600 = vld.sshfl [vmem:[#allocation1] sm:$0xff pattern:$0x75316420]
        %v601 = vld.sshfl [vmem:[#allocation1 + $0x8] sm:$0xff pattern:$0x75316420]
        %v602 = vld.sshfl [vmem:[#allocation1 + $0x10] sm:$0xff pattern:$0x75316420]
        %603 = vrot.lane.b32.xlu0 %v600, 95
        %v604 = vpop.permute.xlu0 %603
        %605 = vrot.lane.b32.xlu0 %v601, 95
        %v606 = vpop.permute.xlu0 %605
        %607 = vrot.lane.b32.xlu0 %v602, 95
        %v608 = vpop.permute.xlu0 %607
        %vm609 = vcmask 777216
        %v610 = vsel %vm609, %v604, %v606
        %v611 = vsel %vm609, %v606, %v608
        %v613 = vsel %vm236, %v210, 0
        %v616 = vsel %vm236, %v211, 0
        %v618 = vsel %vm243, %v610, 0
        %v620 = vsel %vm243, %v611, 0
        %622 = vmatpush.msra.mxu0 0.0
        %623 = vmatpush.msra.mxu0 0.0
        %624 = vmatpush.msra.mxu0 0.0
        %625 = vmatpush.msra.mxu0 0.0
        %626 = vmatpush.msra.mxu0 0.0
        %627 = vmatpush.msra.mxu0 0.0
        %628 = vmatpush.msra.mxu0 0.0
        %629 = vmatpush.msra.mxu0 0.0
        %630 = vmatpush.msra.mxu0 0.0
        %631 = vmatpush.msra.mxu0 0.0
        %632 = vmatpush.msra.mxu0 0.0
        %633 = vmatpush.msra.mxu0 0.0
        %634 = vmatpush.msra.mxu0 0.0
        %635 = vmatpush.msra.mxu0 0.0
        %636 = vmatpush.msra.mxu0 0.0
        %637 = vmatpush.msra.mxu0 %v618
        %638 = vmatmul.f32.gmra.mxu0 %v613
        %v639 = vpop.f32.mrf.mxu0
        %v640 = vadd.f32 0.0, %v639
        %641 = vmatmul.f32.gmra.mxu0 %v616
        %v642 = vpop.f32.mrf.mxu0
        %v643 = vadd.f32 0.0, %v642
        %644 = vdwg.mxu0
        %645 = vmatpush.msra.mxu0 0.0
        %646 = vmatpush.msra.mxu0 0.0
        %647 = vmatpush.msra.mxu0 0.0
        %648 = vmatpush.msra.mxu0 0.0
        %649 = vmatpush.msra.mxu0 0.0
        %650 = vmatpush.msra.mxu0 0.0
        %651 = vmatpush.msra.mxu0 0.0
        %652 = vmatpush.msra.mxu0 0.0
        %653 = vmatpush.msra.mxu0 0.0
        %654 = vmatpush.msra.mxu0 0.0
        %655 = vmatpush.msra.mxu0 0.0
        %656 = vmatpush.msra.mxu0 0.0
        %657 = vmatpush.msra.mxu0 0.0
        %658 = vmatpush.msra.mxu0 0.0
        %659 = vmatpush.msra.mxu0 0.0
        %660 = vmatpush.msra.mxu0 %v620
        %661 = vmatmul.f32.gmra.mxu0 %v613
        %v662 = vpop.f32.mrf.mxu0
        %v663 = vadd.f32 0.0, %v662
        %664 = vmatmul.f32.gmra.mxu0 %v616
        %v665 = vpop.f32.mrf.mxu0
        %v666 = vadd.f32 0.0, %v665
        %667 = vdwg.mxu0
        %v668 = vadd.f32 %v565, %v640
        %v669 = vadd.f32 %v588, %v663
        %v670 = vadd.f32 %v568, %v643
        %v671 = vadd.f32 %v591, %v666
        %v672 = vadd.f32 %v443, %v668
        %v673 = vadd.f32 %v444, %v669
        %v674 = vadd.f32 %v445, %v670
        %v675 = vadd.f32 %v446, %v671
        %v676 = vld [vmem:[%s195] sm:$0xff]
        %v677 = vld [vmem:[%s195 + $0x8] sm:$0xf]
        %680 = vst [vmem:[#allocation1] ss:$2 sm:$0xff] %v676
        %s681 = scalar_lea.vmem [#allocation1], 16
        %682 = vst [vmem:[%s681] ss:$2 sm:$0xff] %v677
        %v683 = vld.sshfl [vmem:[#allocation1] sm:$0xff pattern:$0x75316420]
        %v684 = vld.sshfl [vmem:[#allocation1 + $0x8] sm:$0xff pattern:$0x75316420]
        %v685 = vld.sshfl [vmem:[#allocation1 + $0x10] sm:$0xff pattern:$0x75316420]
        %686 = vrot.lane.b32.xlu0 %v683, 110
        %v687 = vpop.permute.xlu0 %686
        %688 = vrot.lane.b32.xlu0 %v684, 110
        %v689 = vpop.permute.xlu0 %688
        %690 = vrot.lane.b32.xlu0 %v685, 110
        %v691 = vpop.permute.xlu0 %690
        %vm692 = vcmask 900096
        %v693 = vsel %vm692, %v687, %v689
        %v694 = vsel %vm692, %v689, %v691
        %v696 = vsel %vm236, %v206, 0
        %v699 = vsel %vm236, %v207, 0
        %v701 = vsel %vm243, %v693, 0
        %v703 = vsel %vm243, %v694, 0
        %705 = vmatpush.msra.mxu0 0.0
        %706 = vmatpush.msra.mxu0 0.0
        %707 = vmatpush.msra.mxu0 0.0
        %708 = vmatpush.msra.mxu0 0.0
        %709 = vmatpush.msra.mxu0 0.0
        %710 = vmatpush.msra.mxu0 0.0
        %711 = vmatpush.msra.mxu0 0.0
        %712 = vmatpush.msra.mxu0 0.0
        %713 = vmatpush.msra.mxu0 0.0
        %714 = vmatpush.msra.mxu0 0.0
        %715 = vmatpush.msra.mxu0 0.0
        %716 = vmatpush.msra.mxu0 0.0
        %717 = vmatpush.msra.mxu0 0.0
        %718 = vmatpush.msra.mxu0 0.0
        %719 = vmatpush.msra.mxu0 0.0
        %720 = vmatpush.msra.mxu0 %v701
        %721 = vmatmul.f32.gmra.mxu0 %v696
        %v722 = vpop.f32.mrf.mxu0
        %v723 = vadd.f32 0.0, %v722
        %724 = vmatmul.f32.gmra.mxu0 %v699
        %v725 = vpop.f32.mrf.mxu0
        %v726 = vadd.f32 0.0, %v725
        %727 = vdwg.mxu0
        %728 = vmatpush.msra.mxu0 0.0
        %729 = vmatpush.msra.mxu0 0.0
        %730 = vmatpush.msra.mxu0 0.0
        %731 = vmatpush.msra.mxu0 0.0
        %732 = vmatpush.msra.mxu0 0.0
        %733 = vmatpush.msra.mxu0 0.0
        %734 = vmatpush.msra.mxu0 0.0
        %735 = vmatpush.msra.mxu0 0.0
        %736 = vmatpush.msra.mxu0 0.0
        %737 = vmatpush.msra.mxu0 0.0
        %738 = vmatpush.msra.mxu0 0.0
        %739 = vmatpush.msra.mxu0 0.0
        %740 = vmatpush.msra.mxu0 0.0
        %741 = vmatpush.msra.mxu0 0.0
        %742 = vmatpush.msra.mxu0 0.0
        %743 = vmatpush.msra.mxu0 %v703
        %744 = vmatmul.f32.gmra.mxu0 %v696
        %v745 = vpop.f32.mrf.mxu0
        %v746 = vadd.f32 0.0, %v745
        %747 = vmatmul.f32.gmra.mxu0 %v699
        %v748 = vpop.f32.mrf.mxu0
        %v749 = vadd.f32 0.0, %v748
        %750 = vdwg.mxu0
        %751 = vst [vmem:[#allocation1] ss:$2 sm:$0xff] %v676
        %s752 = scalar_lea.vmem [#allocation1], 16
        %753 = vst [vmem:[%s752] ss:$2 sm:$0xff] %v677
        %v754 = vld.sshfl [vmem:[#allocation1] sm:$0xff pattern:$0x75316420]
        %v755 = vld.sshfl [vmem:[#allocation1 + $0x8] sm:$0xff pattern:$0x75316420]
        %v756 = vld.sshfl [vmem:[#allocation1 + $0x10] sm:$0xff pattern:$0x75316420]
        %757 = vrot.lane.b32.xlu0 %v754, 126
        %v758 = vpop.permute.xlu0 %757
        %759 = vrot.lane.b32.xlu0 %v755, 126
        %v760 = vpop.permute.xlu0 %759
        %761 = vrot.lane.b32.xlu0 %v756, 126
        %v762 = vpop.permute.xlu0 %761
        %vm763 = vcmask 1031168
        %v764 = vsel %vm763, %v758, %v760
        %v765 = vsel %vm763, %v760, %v762
        %v767 = vsel %vm236, %v200, 0
        %v770 = vsel %vm236, %v201, 0
        %v772 = vsel %vm243, %v764, 0
        %v774 = vsel %vm243, %v765, 0
        %776 = vmatpush.msra.mxu0 0.0
        %777 = vmatpush.msra.mxu0 0.0
        %778 = vmatpush.msra.mxu0 0.0
        %779 = vmatpush.msra.mxu0 0.0
        %780 = vmatpush.msra.mxu0 0.0
        %781 = vmatpush.msra.mxu0 0.0
        %782 = vmatpush.msra.mxu0 0.0
        %783 = vmatpush.msra.mxu0 0.0
        %784 = vmatpush.msra.mxu0 0.0
        %785 = vmatpush.msra.mxu0 0.0
        %786 = vmatpush.msra.mxu0 0.0
        %787 = vmatpush.msra.mxu0 0.0
        %788 = vmatpush.msra.mxu0 0.0
        %789 = vmatpush.msra.mxu0 0.0
        %790 = vmatpush.msra.mxu0 0.0
        %791 = vmatpush.msra.mxu0 %v772
        %792 = vmatmul.f32.gmra.mxu0 %v767
        %v793 = vpop.f32.mrf.mxu0
        %v794 = vadd.f32 %v723, %v793
        %795 = vmatmul.f32.gmra.mxu0 %v770
        %v796 = vpop.f32.mrf.mxu0
        %v797 = vadd.f32 %v726, %v796
        %798 = vdwg.mxu0
        %799 = vmatpush.msra.mxu0 0.0
        %800 = vmatpush.msra.mxu0 0.0
        %801 = vmatpush.msra.mxu0 0.0
        %802 = vmatpush.msra.mxu0 0.0
        %803 = vmatpush.msra.mxu0 0.0
        %804 = vmatpush.msra.mxu0 0.0
        %805 = vmatpush.msra.mxu0 0.0
        %806 = vmatpush.msra.mxu0 0.0
        %807 = vmatpush.msra.mxu0 0.0
        %808 = vmatpush.msra.mxu0 0.0
        %809 = vmatpush.msra.mxu0 0.0
        %810 = vmatpush.msra.mxu0 0.0
        %811 = vmatpush.msra.mxu0 0.0
        %812 = vmatpush.msra.mxu0 0.0
        %813 = vmatpush.msra.mxu0 0.0
        %814 = vmatpush.msra.mxu0 %v774
        %815 = vmatmul.f32.gmra.mxu0 %v767
        %v816 = vpop.f32.mrf.mxu0
        %v817 = vadd.f32 %v746, %v816
        %818 = vmatmul.f32.gmra.mxu0 %v770
        %v819 = vpop.f32.mrf.mxu0
        %v820 = vadd.f32 %v749, %v819
        %821 = vdwg.mxu0
        %v822 = vld [vmem:[%s195] sm:$0xff]
        %v823 = vld [vmem:[%s195 + $0x8] sm:$0xf]
        %826 = vst [vmem:[#allocation1] ss:$2 sm:$0xff] %v822
        %s827 = scalar_lea.vmem [#allocation1], 16
        %828 = vst [vmem:[%s827] ss:$2 sm:$0xff] %v823
        %v829 = vld.sshfl [vmem:[#allocation1] sm:$0xff pattern:$0x75316420]
        %v830 = vld.sshfl [vmem:[#allocation1 + $0x8] sm:$0xff pattern:$0x75316420]
        %v831 = vld.sshfl [vmem:[#allocation1 + $0x10] sm:$0xff pattern:$0x75316420]
        %832 = vrot.lane.b32.xlu0 %v829, 94
        %v833 = vpop.permute.xlu0 %832
        %834 = vrot.lane.b32.xlu0 %v830, 94
        %v835 = vpop.permute.xlu0 %834
        %836 = vrot.lane.b32.xlu0 %v831, 94
        %v837 = vpop.permute.xlu0 %836
        %vm838 = vcmask 769024
        %v839 = vsel %vm838, %v833, %v835
        %v840 = vsel %vm838, %v835, %v837
        %v842 = vsel %vm236, %v212, 0
        %v845 = vsel %vm236, %v213, 0
        %v847 = vsel %vm243, %v839, 0
        %v849 = vsel %vm243, %v840, 0
        %851 = vmatpush.msra.mxu0 0.0
        %852 = vmatpush.msra.mxu0 0.0
        %853 = vmatpush.msra.mxu0 0.0
        %854 = vmatpush.msra.mxu0 0.0
        %855 = vmatpush.msra.mxu0 0.0
        %856 = vmatpush.msra.mxu0 0.0
        %857 = vmatpush.msra.mxu0 0.0
        %858 = vmatpush.msra.mxu0 0.0
        %859 = vmatpush.msra.mxu0 0.0
        %860 = vmatpush.msra.mxu0 0.0
        %861 = vmatpush.msra.mxu0 0.0
        %862 = vmatpush.msra.mxu0 0.0
        %863 = vmatpush.msra.mxu0 0.0
        %864 = vmatpush.msra.mxu0 0.0
        %865 = vmatpush.msra.mxu0 0.0
        %866 = vmatpush.msra.mxu0 %v847
        %867 = vmatmul.f32.gmra.mxu0 %v842
        %v868 = vpop.f32.mrf.mxu0
        %v869 = vadd.f32 0.0, %v868
        %870 = vmatmul.f32.gmra.mxu0 %v845
        %v871 = vpop.f32.mrf.mxu0
        %v872 = vadd.f32 0.0, %v871
        %873 = vdwg.mxu0
        %874 = vmatpush.msra.mxu0 0.0
        %875 = vmatpush.msra.mxu0 0.0
        %876 = vmatpush.msra.mxu0 0.0
        %877 = vmatpush.msra.mxu0 0.0
        %878 = vmatpush.msra.mxu0 0.0
        %879 = vmatpush.msra.mxu0 0.0
        %880 = vmatpush.msra.mxu0 0.0
        %881 = vmatpush.msra.mxu0 0.0
        %882 = vmatpush.msra.mxu0 0.0
        %883 = vmatpush.msra.mxu0 0.0
        %884 = vmatpush.msra.mxu0 0.0
        %885 = vmatpush.msra.mxu0 0.0
        %886 = vmatpush.msra.mxu0 0.0
        %887 = vmatpush.msra.mxu0 0.0
        %888 = vmatpush.msra.mxu0 0.0
        %889 = vmatpush.msra.mxu0 %v849
        %890 = vmatmul.f32.gmra.mxu0 %v842
        %v891 = vpop.f32.mrf.mxu0
        %v892 = vadd.f32 0.0, %v891
        %893 = vmatmul.f32.gmra.mxu0 %v845
        %v894 = vpop.f32.mrf.mxu0
        %v895 = vadd.f32 0.0, %v894
        %896 = vdwg.mxu0
        %v897 = vadd.f32 %v794, %v869
        %v898 = vadd.f32 %v817, %v892
        %v899 = vadd.f32 %v797, %v872
        %v900 = vadd.f32 %v820, %v895
        %v901 = vperm.slane %v216, 2
        %v902 = vperm.slane %v216, 6
        %v905 = vperm.slane %v901, 2
        %v906 = vperm.slane %v902, 2
        %v907 = vmul.f32 %v897, %v905
        %v908 = vmul.f32 %v898, %v906
        %v909 = vmul.f32 %v899, %v905
        %v910 = vmul.f32 %v900, %v906
        %v911 = vadd.f32 %v672, %v907
        %v912 = vadd.f32 %v673, %v908
        %v913 = vadd.f32 %v674, %v909
        %v914 = vadd.f32 %v675, %v910
        %916 = vset.pattern.permute.xlu0 0
        %917 = vperm.xlu0 %916, %v214
        %v918 = vpop.permute.xlu0 %917
        %921 = vset.pattern.permute.xlu0 0
        %922 = vperm.xlu0 %921, %v215
        %v923 = vpop.permute.xlu0 %922
        %v925 = vadd.f32 %v911, %v918
        %v926 = vadd.f32 %v912, %v918
        %v927 = vadd.f32 %v913, %v923
        %v928 = vadd.f32 %v914, %v923
        %v929 = vmax.f32 %v925, 0.0
        %v930 = vmax.f32 %v926, 0.0
        %v931 = vmax.f32 %v927, 0.0
        %v932 = vmax.f32 %v928, 0.0
        %933 = vst [vmem:[%s190] sm:$0xff] %v929
        %934 = vst [vmem:[%s190 + $0x8] sm:$0xff] %v930
        %935 = vst [vmem:[%s190 + $0x10] sm:$0xff] %v931
        %936 = vst [vmem:[%s190 + $0x18] sm:$0xff] %v932
        %s937 = sand.u32 %s115, 1
        %s938 = scalar_lea.sflag [#allocation3], %s937
        %s939 = sand.u32 %s115, 1
        %s940 = smul.addr %s939, 32
        %s941 = scalar_lea.vmem [#allocation2], %s940
        // Predicated region
        $region37: #{tpu_custom_call.1} parent=35 // pred_check
          %p942 = pneg %p125
        $region38: #{tpu_custom_call.1} parent=35 // pred_check_branch
          %944 = sbr.rel (%p942) target = $region40
        $region39: #{tpu_custom_call.1} parent=35 // pred_region
          %946 = vsyncadd %s938, 0
          %s947 = smul.addr %s18, 4
          %s948 = smul.addr %s947, 8
          %s949 = scalar_lea.hbm %s4, %s948
          %s950 = sshll.u32 %s941, 4
          %s951 = int_to_ptr.vmem [resolvable:$true] %s950
          %s952 = sshll.u32 %s949, 4
          %s953 = int_to_ptr.hbm [resolvable:$true] %s952
          %958 = dma.vmem_to_hbm [thread:$0]  %s951, 512, %s953, %s938, 256, 256, 16
        $region40: #{tpu_custom_call.1} parent=35 // pred_fallthru
          _
      $region36: #{tpu_custom_call.1} parent=5 // pred_fallthru
        _
      %p959 = scmp.le.s32.totalorder 2, %s13
      // Predicated region
      $region41: #{tpu_custom_call.1} parent=5 // pred_check
        %p960 = pneg %p959
      $region42: #{tpu_custom_call.1} parent=5 // pred_check_branch
        %962 = sbr.rel (%p960) target = $region44
      $region43: #{tpu_custom_call.1} parent=5 // pred_region
        %s963 = ssub.s32 %s13, 2
        // Predicated region
        $region45: #{tpu_custom_call.1} parent=43 // pred_check
          %p964 = pneg %p131
        $region46: #{tpu_custom_call.1} parent=43 // pred_check_branch
          %966 = sbr.rel (%p964) target = $region48
        $region47: #{tpu_custom_call.1} parent=43 // pred_region
          %s967 = sand.u32 %s116, 1
          %s968 = scalar_lea.sflag [#allocation3], %s967
          %s969 = sand.u32 %s116, 1
          %s970 = smul.addr %s969, 32
          %s971 = scalar_lea.vmem [#allocation2], %s970
          %973 = dma.done %s968, 512
        $region48: #{tpu_custom_call.1} parent=43 // pred_fallthru
          _
      $region44: #{tpu_custom_call.1} parent=5 // pred_fallthru
        _
    $region6: #{tpu_custom_call.1} parent=1 // loop_footer
      %s17 = sadd.s32 1, %s13
    $region7: #{tpu_custom_call.1} parent=1 // loop_footer_branch
      %12 = sbr.rel target = $region3
    $region8: #{tpu_custom_call.1} parent=1 // loop_exit
      _
    %974 = vsyncpa [#allocation3], 1
    %s975 = scalar_lea.sflag [#allocation3], 1
    %976 = vsyncpa %s975, 1

</llo_original>
